<compile_context>
chip_gen: v5e
topology: v5e:2x2
jax: 0.10.0
libtpu: 0.0.40
codegen_flags: <defaults>
</compile_context>

<pallas_src>
import jax
import jax.numpy as jnp
from jax.experimental import pallas as pl
from jax.experimental.pallas import tpu as pltpu


def _audio_to_embedding_kernel(x_ref, w1_ref, b1_ref, w2_ref, y_ref, spk_ref):
    # x_ref:   (1, tTp, Dp)   packed (batch, T-tile) block
    # w1_ref:  (Dp, H1p)      block-diagonal packed main weight (resident)
    # b1_ref:  (1, H1p)       tiled bias (resident)
    # w2_ref:  (Dp, H2)       stacked speaker weight (resident)
    # y_ref:   (1, tTp, H1p)  lane-dense main output tile
    # spk_ref: (1, 1, H2)     f32 speaker accumulator, resident across t axis
    t = pl.program_id(1)

    x = x_ref[0]  # (tTp, Dp)

    # Main embedding: one lane-dense MXU matmul, f32 accumulation, native-dtype store.
    y = jnp.dot(x, w1_ref[...], preferred_element_type=jnp.float32) + b1_ref[...]
    y_ref[0] = y.astype(y_ref.dtype)

    # Speaker branch: reduce rows first, then a single (1, Dp) @ (Dp, H2) matmul.
    # (Bias term T*b2 is added once in the wrapper.)
    if x.dtype == jnp.float32:
        xsum = jnp.sum(x, axis=0, keepdims=True)                       # (1, Dp) f32
    else:
        # bf16 etc.: MXU row-sum with f32 accumulation avoids casting the tile.
        ones = jnp.ones((1, x.shape[0]), dtype=x.dtype)
        xsum = jnp.dot(ones, x, preferred_element_type=jnp.float32)    # (1, Dp) f32
    spk = jnp.dot(xsum, w2_ref[...].astype(jnp.float32),
                  preferred_element_type=jnp.float32)                  # (1, H2) f32

    @pl.when(t == 0)
    def _():
        spk_ref[...] = jnp.zeros_like(spk_ref)

    spk_ref[0] += spk


def prepare_params(w1, b1, w2, b2, *, lane_width=128):
    """One-time parameter prep: transpose + lane-pack (block-diagonal) weights.

    PyTorch nn.Linear stores weights as (out, in); the kernel wants (in, out).
    When audio_dim divides lane_width, p = lane_width // audio_dim time steps are
    packed into one lane-dense row: W1 -> kron(I_p, W1^T), b1 -> tile(b1, p),
    W2 -> vstack of p copies of W2^T (the row-sum speaker identity still holds).
    (On v6e/v7x, lane_width=256 would fill the 256-deep MXU contraction; 128 is
    already lane-dense so the extra gain is marginal.)
    """
    w1_t = jnp.asarray(w1).T                  # (D, H1)
    b1_r = jnp.asarray(b1).reshape(1, -1)     # (1, H1)
    w2_t = jnp.asarray(w2).T                  # (D, H2)
    b2_r = jnp.asarray(b2)                    # (H2,)

    D, H1 = w1_t.shape
    p = lane_width // D if (D < lane_width and lane_width % D == 0) else 1

    if p > 1:
        w1_p = jnp.kron(jnp.eye(p, dtype=w1_t.dtype), w1_t)   # (p*D, p*H1) block-diag
        b1_p = jnp.tile(b1_r, (1, p))                          # (1, p*H1)
        w2_p = jnp.tile(w2_t, (p, 1))                          # (p*D, H2)
    else:
        w1_p, b1_p, w2_p = w1_t, b1_r, w2_t

    return {"w1": w1_p, "b1": b1_p, "w2": w2_p, "b2": b2_r,
            "pack": p, "D": D, "H1": H1}


def _vmem_and_max_tile():
    """Per-generation VMEM limit and max packed-row tile."""
    cap = 64 * 1024 * 1024  # conservative default (v7x-sized)
    try:
        info = pltpu.get_tpu_info()
        cap = int(getattr(info, "vmem_capacity_bytes", cap))
    except Exception:
        pass
    if cap >= 128 * 1024 * 1024:          # v5e / v6e: plenty of physical VMEM
        return 64 * 1024 * 1024, 1024
    return 32 * 1024 * 1024, 512          # v7x-safe


def audio_to_embedding_plug(x, params, *, max_packed_tile=None):
    """x: (B, T, D). Returns (y: (B, T, H1), spk: (B, H2))."""
    B, T, D = x.shape
    p = params["pack"]
    H1 = params["H1"]
    assert D == params["D"], "audio_dim mismatch with prepared params"
    w1, b1, w2, b2 = params["w1"], params["b1"], params["w2"], params["b2"]
    Dp, H1p = w1.shape
    H2 = w2.shape[1]

    vmem_limit, max_tile = _vmem_and_max_tile()
    if max_packed_tile is not None:
        max_tile = int(max_packed_tile)

    # Cap the tile so double-buffered x+y tiles stay well inside the VMEM budget
    # (weights and headroom use the rest).
    bytes_per_row = (Dp + H1p) * jnp.dtype(x.dtype).itemsize
    row_cap = max(8, ((vmem_limit // 4) // bytes_per_row) // 8 * 8)
    max_tile = max(8, min((max_tile // 8) * 8, row_cap))

    # Pad T so it packs into lane-dense rows and tiles evenly; padded rows are
    # zero (no speaker-sum contribution) and are sliced off y afterwards.
    Tp = pl.cdiv(T, p)                       # packed rows needed
    tTp = Tp if Tp <= max_tile else max_tile
    nT = pl.cdiv(Tp, tTp)
    T_pad = nT * tTp * p
    if T_pad != T:
        x = jnp.pad(x, ((0, 0), (0, T_pad - T), (0, 0)))

    # Lane-pack: (B, T_pad, D) -> (B, T_pad/p, p*D). Contiguous, free.
    xp = x.reshape(B, T_pad // p, Dp)

    grid_spec = pltpu.PrefetchScalarGridSpec(
        num_scalar_prefetch=0,
        grid=(B, nT),
        in_specs=[
            pl.BlockSpec((1, tTp, Dp), lambda b, t: (b, t, 0)),    # x tile
            pl.BlockSpec((Dp, H1p), lambda b, t: (0, 0)),          # W1' (resident)
            pl.BlockSpec((1, H1p), lambda b, t: (0, 0)),           # b1' (resident)
            pl.BlockSpec((Dp, H2), lambda b, t: (0, 0)),           # W2' (resident)
        ],
        out_specs=[
            pl.BlockSpec((1, tTp, H1p), lambda b, t: (b, t, 0)),   # y tile (lane-dense)
            pl.BlockSpec((1, 1, H2), lambda b, t: (b, 0, 0)),      # spk acc (resident over t)
        ],
    )

    yp, spk = pl.pallas_call(
        _audio_to_embedding_kernel,
        out_shape=(
            jax.ShapeDtypeStruct((B, T_pad // p, H1p), x.dtype),   # native-dtype y
            jax.ShapeDtypeStruct((B, 1, H2), jnp.float32),         # f32 speaker sum
        ),
        grid_spec=grid_spec,
        compiler_params=pltpu.CompilerParams(
            dimension_semantics=("parallel", "arbitrary"),  # B megacore-shardable
            vmem_limit_bytes=vmem_limit,
        ),
    )(xp, w1, b1, w2)

    # Unpack y (contiguous reshape) and drop any T padding.
    y = yp.reshape(B, T_pad, H1)[:, :T, :]
    # Each of the T (true) rows contributes one +b2 to the speaker sum.
    spk = spk[:, 0, :] + jnp.float32(T) * b2.astype(jnp.float32)
    return y, spk.astype(x.dtype)


if __name__ == "__main__":
    # Small shapes consistent with the module's forward.
    B, T = 2, 8
    audio_dim, out_hs, out_speaker_hs = 32, 32, 16

    key = jax.random.PRNGKey(0)
    kx, kw1, kb1, kw2, kb2, kx2 = jax.random.split(key, 6)

    # PyTorch nn.Linear weight layout: (out_features, in_features).
    w1 = jax.random.normal(kw1, (out_hs, audio_dim), dtype=jnp.float32) * 0.1
    b1 = jax.random.normal(kb1, (out_hs,), dtype=jnp.float32) * 0.1
    w2 = jax.random.normal(kw2, (out_speaker_hs, audio_dim), dtype=jnp.float32) * 0.1
    b2 = jax.random.normal(kb2, (out_speaker_hs,), dtype=jnp.float32) * 0.1

    params = prepare_params(w1, b1, w2, b2)   # one-time, hoisted (lane-packed weights)

    def reference(xin):
        y_r = jnp.einsum("btd,hd->bth", xin, w1) + b1
        s_r = (jnp.einsum("btd,hd->bth", xin, w2) + b2).sum(axis=1)
        return y_r, s_r

    # Test 1: module-spec shapes (lane-packed fast path, single T tile).
    x = jax.random.normal(kx, (B, T, audio_dim), dtype=jnp.float32)
    y, spk = audio_to_embedding_plug(x, params)
    jax.block_until_ready((y, spk))
    y_exp, spk_exp = reference(x)
    assert y.shape == (B, T, out_hs)
    assert spk.shape == (B, out_speaker_hs)
    assert jnp.allclose(y, y_exp, atol=2e-4, rtol=1e-4)
    assert jnp.allclose(spk, spk_exp, atol=2e-4, rtol=1e-4)

    # Test 2: T not divisible by the packing factor + forced small tile so the
    # nT > 1 accumulation / zero-padding path is exercised (review concern).
    T2 = 70
    x2 = jax.random.normal(kx2, (B, T2, audio_dim), dtype=jnp.float32)
    y2, spk2 = audio_to_embedding_plug(x2, params, max_packed_tile=8)
    jax.block_until_ready((y2, spk2))
    y2_exp, spk2_exp = reference(x2)
    assert y2.shape == (B, T2, out_hs)
    assert spk2.shape == (B, out_speaker_hs)
    assert jnp.allclose(y2, y2_exp, atol=2e-4, rtol=1e-4)
    assert jnp.allclose(spk2, spk2_exp, atol=2e-4, rtol=1e-4)

    print("KERNEL_OK")
</pallas_src>

<mosaic_0001>
module attributes {stable_mosaic.version = 11 : i64} {
  func.func @_audio_to_embedding_kernel(%arg0: i32, %arg1: i32, %arg2: memref<1x2x128xf32, #tpu.memory_space<vmem>>, %arg3: memref<128x128xf32, #tpu.memory_space<vmem>>, %arg4: memref<1x128xf32, #tpu.memory_space<vmem>>, %arg5: memref<128x16xf32, #tpu.memory_space<vmem>>, %arg6: memref<1x2x128xf32, #tpu.memory_space<vmem>>, %arg7: memref<1x1x16xf32, #tpu.memory_space<vmem>>) attributes {dimension_semantics = [#tpu.dimension_semantics<parallel>, #tpu.dimension_semantics<arbitrary>], iteration_bounds = array<i64: 2, 1>, scalar_prefetch = 0 : i64, scratch_operands = 0 : i64, tpu.core_type = #tpu.core_type<tc>, window_params = [{transform_indices = @transform_0, window_bounds = array<i64: 1, 2, 128>}, {pipeline_mode = #tpu.pipeline_mode<synchronous>, transform_indices = @transform_1, window_bounds = array<i64: 128, 128>}, {pipeline_mode = #tpu.pipeline_mode<synchronous>, transform_indices = @transform_2, window_bounds = array<i64: 1, 128>}, {pipeline_mode = #tpu.pipeline_mode<synchronous>, transform_indices = @transform_3, window_bounds = array<i64: 128, 16>}, {transform_indices = @transform_4, window_bounds = array<i64: 1, 2, 128>}, {transform_indices = @transform_5, window_bounds = array<i64: 1, 1, 16>}]} {
    %c0 = arith.constant 0 : index
    %c0_0 = arith.constant 0 : index
    %c0_1 = arith.constant 0 : index
    %0 = vector.load %arg2[%c0, %c0_0, %c0_1] : memref<1x2x128xf32, #tpu.memory_space<vmem>>, vector<1x2x128xf32>
    %1 = vector.shape_cast %0 : vector<1x2x128xf32> to vector<2x128xf32>
    %c0_2 = arith.constant 0 : index
    %c0_3 = arith.constant 0 : index
    %2 = vector.load %arg3[%c0_2, %c0_3] : memref<128x128xf32, #tpu.memory_space<vmem>>, vector<128x128xf32>
    %cst = arith.constant dense<0.000000e+00> : vector<2x128xf32>
    %3 = tpu.matmul %1, %2, %cst {dimension_numbers = #tpu.dot_dimension_numbers<[1], [0], [0], [1], [0, 0, 1, 1], [], []>} : vector<2x128xf32>, vector<128x128xf32>, vector<2x128xf32> -> vector<2x128xf32>
    %c0_4 = arith.constant 0 : index
    %c0_5 = arith.constant 0 : index
    %4 = vector.load %arg4[%c0_4, %c0_5] : memref<1x128xf32, #tpu.memory_space<vmem>>, vector<1x128xf32>
    %5 = vector.broadcast %4 : vector<1x128xf32> to vector<2x128xf32>
    %6 = arith.addf %3, %5 : vector<2x128xf32>
    %c0_6 = arith.constant 0 : index
    %c0_7 = arith.constant 0 : index
    %c0_8 = arith.constant 0 : index
    %7 = vector.load %arg6[%c0_6, %c0_7, %c0_8] : memref<1x2x128xf32, #tpu.memory_space<vmem>>, vector<1x2x128xf32>
    %8 = vector.shape_cast %7 : vector<1x2x128xf32> to vector<2x128xf32>
    %9 = vector.shape_cast %6 : vector<2x128xf32> to vector<1x2x128xf32>
    tpu.vector_store %arg6[%c0_6, %c0_7, %c0_8], %9 {strides = array<i32>} : memref<1x2x128xf32, #tpu.memory_space<vmem>>, vector<1x2x128xf32>,
    %cst_9 = arith.constant dense<0.000000e+00> : vector<128xf32>
    %10 = vector.multi_reduction <add>, %1, %cst_9 [0] : vector<2x128xf32> to vector<128xf32>
    %11 = vector.shape_cast %10 : vector<128xf32> to vector<1x128xf32>
    %c0_10 = arith.constant 0 : index
    %c0_11 = arith.constant 0 : index
    %12 = vector.load %arg5[%c0_10, %c0_11] : memref<128x16xf32, #tpu.memory_space<vmem>>, vector<128x16xf32>
    %cst_12 = arith.constant dense<0.000000e+00> : vector<1x16xf32>
    %13 = tpu.matmul %11, %12, %cst_12 {dimension_numbers = #tpu.dot_dimension_numbers<[1], [0], [0], [1], [0, 0, 1, 1], [], []>} : vector<1x128xf32>, vector<128x16xf32>, vector<1x16xf32> -> vector<1x16xf32>
    %c0_i32 = arith.constant 0 : i32
    %14 = arith.cmpi eq, %arg1, %c0_i32 : i32
    %15 = arith.extui %14 : i1 to i32
    %c0_i32_13 = arith.constant 0 : i32
    %16 = arith.cmpi ne, %15, %c0_i32_13 : i32
    scf.if %16 {
      %cst_20 = arith.constant 0.000000e+00 : f32
      %23 = vector.broadcast %cst_20 : f32 to vector<1x1x16xf32>
      %c0_21 = arith.constant 0 : index
      %c0_22 = arith.constant 0 : index
      %c0_23 = arith.constant 0 : index
      %24 = vector.load %arg7[%c0_21, %c0_22, %c0_23] : memref<1x1x16xf32, #tpu.memory_space<vmem>>, vector<1x1x16xf32>
      tpu.vector_store %arg7[%c0_21, %c0_22, %c0_23], %23 {strides = array<i32>} : memref<1x1x16xf32, #tpu.memory_space<vmem>>, vector<1x1x16xf32>,
    } else {
    }
    %c0_14 = arith.constant 0 : index
    %c0_15 = arith.constant 0 : index
    %c0_16 = arith.constant 0 : index
    %17 = vector.load %arg7[%c0_14, %c0_15, %c0_16] : memref<1x1x16xf32, #tpu.memory_space<vmem>>, vector<1x1x16xf32>
    %18 = vector.shape_cast %17 : vector<1x1x16xf32> to vector<1x16xf32>
    %19 = arith.addf %18, %13 : vector<1x16xf32>
    %c0_17 = arith.constant 0 : index
    %c0_18 = arith.constant 0 : index
    %c0_19 = arith.constant 0 : index
    %20 = vector.load %arg7[%c0_17, %c0_18, %c0_19] : memref<1x1x16xf32, #tpu.memory_space<vmem>>, vector<1x1x16xf32>
    %21 = vector.shape_cast %20 : vector<1x1x16xf32> to vector<1x16xf32>
    %22 = vector.shape_cast %19 : vector<1x16xf32> to vector<1x1x16xf32>
    tpu.vector_store %arg7[%c0_17, %c0_18, %c0_19], %22 {strides = array<i32>} : memref<1x1x16xf32, #tpu.memory_space<vmem>>, vector<1x1x16xf32>,
    return
  }
  func.func @transform_0(%arg0: i32, %arg1: i32) -> (i32, i32, i32) {
    %c0_i32 = arith.constant 0 : i32
    %c0_i32_0 = arith.constant 0 : i32
    return %arg0, %arg1, %c0_i32 : i32, i32, i32
  }
  func.func @transform_1(%arg0: i32, %arg1: i32) -> (i32, i32) {
    %c0_i32 = arith.constant 0 : i32
    %c0_i32_0 = arith.constant 0 : i32
    %c0_i32_1 = arith.constant 0 : i32
    return %c0_i32, %c0_i32_0 : i32, i32
  }
  func.func @transform_2(%arg0: i32, %arg1: i32) -> (i32, i32) {
    %c0_i32 = arith.constant 0 : i32
    %c0_i32_0 = arith.constant 0 : i32
    %c0_i32_1 = arith.constant 0 : i32
    return %c0_i32, %c0_i32_0 : i32, i32
  }
  func.func @transform_3(%arg0: i32, %arg1: i32) -> (i32, i32) {
    %c0_i32 = arith.constant 0 : i32
    %c0_i32_0 = arith.constant 0 : i32
    %c0_i32_1 = arith.constant 0 : i32
    return %c0_i32, %c0_i32_0 : i32, i32
  }
  func.func @transform_4(%arg0: i32, %arg1: i32) -> (i32, i32, i32) {
    %c0_i32 = arith.constant 0 : i32
    %c0_i32_0 = arith.constant 0 : i32
    return %arg0, %arg1, %c0_i32 : i32, i32, i32
  }
  func.func @transform_5(%arg0: i32, %arg1: i32) -> (i32, i32, i32) {
    %c0_i32 = arith.constant 0 : i32
    %c0_i32_0 = arith.constant 0 : i32
    %c0_i32_1 = arith.constant 0 : i32
    return %arg0, %c0_i32, %c0_i32_0 : i32, i32, i32
  }
}

</mosaic_0001>

<llo_original>
// kernel: tpu_custom_call.1
$region0: #{tpu_custom_call.1}
  #allocation0 [shape = 'u32[]', space=smem, size = 0x4, offset = 0x4, fixed_abs, tag = 'smem constant byte address 0x4 - core index']
  #allocation1 [shape = 'u32[72,128]{1,0:T(1,128)}', space=vmem, size = 0x9000, scoped, tag = 'internal scratch']
  %s0 = inlined_call_operand.vmem [shape: f32[2,2,128], index: 0, kind: input, shape index: {}]
  %s1 = inlined_call_operand.vmem [shape: f32[128,128], index: 1, kind: input, shape index: {}]
  %s2 = inlined_call_operand.vmem [shape: f32[1,128], index: 2, kind: input, shape index: {}]
  %s3 = inlined_call_operand.vmem [shape: f32[128,16], index: 3, kind: input, shape index: {}]
  %s4 = inlined_call_operand.hbm [shape: f32[2,2,128], index: 4, kind: output, shape index: {0}]
  %s5 = inlined_call_operand.hbm [shape: f32[2,1,16], index: 5, kind: output, shape index: {1}]
  %6 = xla_tuple %s4, %s5
  %s7 = sld [smem:[#allocation0]]
  $region61: #{tpu_custom_call.1} parent=0
    _
  %s9 = ssub.s32 1, %s7
  %s10 = scalar_select 0, %s9, %s7
  $region1: #{tpu_custom_call.1} parent=0
    #allocation2 [shape = 'u8[2048]{0}', space=vmem, size = 0x800, scoped, tag = 'output window, operand 0']
    #allocation3 [shape = 's32[2]{0}', space=sflag, size = 0x8, scoped, tag = 'scoped memory for tpu_custom_call.1']
    #allocation4 [shape = 'u8[1024]{0}', space=vmem, size = 0x400, scoped, tag = 'output window, operand 1']
    #allocation5 [shape = 's32[2]{0}', space=sflag, size = 0x8, scoped, tag = 'scoped memory for tpu_custom_call.1']
    %11 = vsyncpa [#allocation3], 0
    %s12 = scalar_lea.sflag [#allocation3], 1
    %13 = vsyncpa %s12, 0
    %14 = vsyncpa [#allocation5], 0
    %s15 = scalar_lea.sflag [#allocation5], 1
    %16 = vsyncpa %s15, 0
    loop: start=0, step=1, limit=4
    $region2: #{tpu_custom_call.1} parent=1 // loop_pre_header
      _
    $region3: #{tpu_custom_call.1} parent=1 // loop_header
      %s18 = sphi 0, %s22
      %p19 = scmp.ge.s32.totalorder %s18, 4
      %s25 = sphi 0, %s37
      %s26 = sphi 0, %s33
      %s27 = sphi 0, %s25
      %s28 = sphi 0, %s26
      %s29 = sphi 0, %s27
      %s30 = sphi 0, %s28
      %s42 = sphi 0, %s44
      %s45 = sphi 0, %s42
      %s46 = sphi 0, %s45
      %s62 = sphi 0, %s46
      %s66 = sphi 0, %s66
      %s68 = sphi 0, %s66
      %s69 = sphi 0, %s68
      %s83 = sphi 0, %s69
      %s87 = sphi 0, %s87
      %s89 = sphi 0, %s87
      %s90 = sphi 0, %s89
      %s104 = sphi 0, %s90
      %s108 = sphi 0, %s108
      %s110 = sphi 0, %s108
      %s111 = sphi 0, %s110
      %s125 = sphi 0, %s111
      %s133 = sphi 0, %s135
      %s136 = sphi 0, %s133
      %s137 = sphi 0, %s136
      %s153 = sphi 0, %s137
      %s159 = sphi 0, %s161
      %s162 = sphi 0, %s159
      %s163 = sphi 0, %s162
      %s179 = sphi 0, %s163
    $region4: #{tpu_custom_call.1} parent=1 // loop_header_branch
      %21 = sbr.rel (%p19) target = $region8
    $region5: #{tpu_custom_call.1} parent=1 // loop_body
      %s23 = ssub.s32 %s18, 1
      %s24 = ssub.s32 %s18, 2
      %s31 = sadd.s32 1, %s26
      %p32 = scmp.ge.s32.totalorder %s31, 1
      %s33 = scalar_select %p32, 0, %s31
      %s34 = sadd.s32 1, %s25
      %s35 = scalar_select %p32, %s34, %s25
      %p36 = scmp.ge.s32.totalorder %s35, 2
      %s37 = scalar_select %p36, 0, %s35
      %s38 = ssub.s32 %s25, %s37
      %s39 = ssub.s32 %s26, %s33
      %s40 = sor.u32 %s38, %s39
      %p41 = scmp.eq.s32.totalorder %s40, 0
      %s43 = sadd.s32 %s42, 1
      %s44 = scalar_select %p41, %s42, %s43
      %p47 = pneg %p41
      %p48 = scmp.eq.s32.totalorder %s18, 1
      %p49 = por %p47, %p48
      %p50 = scmp.ne.s32.totalorder %s42, %s45
      %p51 = scmp.eq.s32.totalorder %s18, 0
      %p52 = por %p50, %p51
      %p53 = scmp.ne.s32.totalorder %s42, %s45
      %p54 = scmp.eq.s32.totalorder %s23, 1
      %p55 = por %p53, %p54
      %p56 = scmp.ne.s32.totalorder %s45, %s46
      %p57 = scmp.eq.s32.totalorder %s23, 0
      %p58 = por %p56, %p57
      %p59 = scmp.ne.s32.totalorder %s45, %s46
      %p60 = scmp.eq.s32.totalorder %s24, 1
      %p61 = por %p59, %p60
      %p63 = scmp.ne.s32.totalorder %s46, %s62
      %p64 = scmp.eq.s32.totalorder %s24, 0
      %p65 = por %p63, %p64
      %s67 = sadd.s32 %s66, 1
      %p70 = scmp.eq.s32.totalorder %s18, 1
      %p71 = scmp.ne.s32.totalorder %s66, %s68
      %p72 = scmp.eq.s32.totalorder %s18, 0
      %p73 = por %p71, %p72
      %p74 = scmp.ne.s32.totalorder %s66, %s68
      %p75 = scmp.eq.s32.totalorder %s23, 1
      %p76 = por %p74, %p75
      %p77 = scmp.ne.s32.totalorder %s68, %s69
      %p78 = scmp.eq.s32.totalorder %s23, 0
      %p79 = por %p77, %p78
      %p80 = scmp.ne.s32.totalorder %s68, %s69
      %p81 = scmp.eq.s32.totalorder %s24, 1
      %p82 = por %p80, %p81
      %p84 = scmp.ne.s32.totalorder %s69, %s83
      %p85 = scmp.eq.s32.totalorder %s24, 0
      %p86 = por %p84, %p85
      %s88 = sadd.s32 %s87, 1
      %p91 = scmp.eq.s32.totalorder %s18, 1
      %p92 = scmp.ne.s32.totalorder %s87, %s89
      %p93 = scmp.eq.s32.totalorder %s18, 0
      %p94 = por %p92, %p93
      %p95 = scmp.ne.s32.totalorder %s87, %s89
      %p96 = scmp.eq.s32.totalorder %s23, 1
      %p97 = por %p95, %p96
      %p98 = scmp.ne.s32.totalorder %s89, %s90
      %p99 = scmp.eq.s32.totalorder %s23, 0
      %p100 = por %p98, %p99
      %p101 = scmp.ne.s32.totalorder %s89, %s90
      %p102 = scmp.eq.s32.totalorder %s24, 1
      %p103 = por %p101, %p102
      %p105 = scmp.ne.s32.totalorder %s90, %s104
      %p106 = scmp.eq.s32.totalorder %s24, 0
      %p107 = por %p105, %p106
      %s109 = sadd.s32 %s108, 1
      %p112 = scmp.eq.s32.totalorder %s18, 1
      %p113 = scmp.ne.s32.totalorder %s108, %s110
      %p114 = scmp.eq.s32.totalorder %s18, 0
      %p115 = por %p113, %p114
      %p116 = scmp.ne.s32.totalorder %s108, %s110
      %p117 = scmp.eq.s32.totalorder %s23, 1
      %p118 = por %p116, %p117
      %p119 = scmp.ne.s32.totalorder %s110, %s111
      %p120 = scmp.eq.s32.totalorder %s23, 0
      %p121 = por %p119, %p120
      %p122 = scmp.ne.s32.totalorder %s110, %s111
      %p123 = scmp.eq.s32.totalorder %s24, 1
      %p124 = por %p122, %p123
      %p126 = scmp.ne.s32.totalorder %s111, %s125
      %p127 = scmp.eq.s32.totalorder %s24, 0
      %p128 = por %p126, %p127
      %s129 = ssub.s32 %s25, %s37
      %s130 = ssub.s32 %s26, %s33
      %s131 = sor.u32 %s129, %s130
      %p132 = scmp.eq.s32.totalorder %s131, 0
      %s134 = sadd.s32 %s133, 1
      %s135 = scalar_select %p132, %s133, %s134
      %p138 = pneg %p132
      %p139 = scmp.eq.s32.totalorder %s18, 1
      %p140 = por %p138, %p139
      %p141 = scmp.ne.s32.totalorder %s133, %s136
      %p142 = scmp.eq.s32.totalorder %s18, 0
      %p143 = por %p141, %p142
      %p144 = scmp.ne.s32.totalorder %s133, %s136
      %p145 = scmp.eq.s32.totalorder %s23, 1
      %p146 = por %p144, %p145
      %p147 = scmp.ne.s32.totalorder %s136, %s137
      %p148 = scmp.eq.s32.totalorder %s23, 0
      %p149 = por %p147, %p148
      %p150 = scmp.ne.s32.totalorder %s136, %s137
      %p151 = scmp.eq.s32.totalorder %s24, 1
      %p152 = por %p150, %p151
      %p154 = scmp.ne.s32.totalorder %s137, %s153
      %p155 = scmp.eq.s32.totalorder %s24, 0
      %p156 = por %p154, %p155
      %s157 = ssub.s32 %s25, %s37
      %p158 = scmp.eq.s32.totalorder %s157, 0
      %s160 = sadd.s32 %s159, 1
      %s161 = scalar_select %p158, %s159, %s160
      %p164 = pneg %p158
      %p165 = scmp.eq.s32.totalorder %s18, 1
      %p166 = por %p164, %p165
      %p167 = scmp.ne.s32.totalorder %s159, %s162
      %p168 = scmp.eq.s32.totalorder %s18, 0
      %p169 = por %p167, %p168
      %p170 = scmp.ne.s32.totalorder %s159, %s162
      %p171 = scmp.eq.s32.totalorder %s23, 1
      %p172 = por %p170, %p171
      %p173 = scmp.ne.s32.totalorder %s162, %s163
      %p174 = scmp.eq.s32.totalorder %s23, 0
      %p175 = por %p173, %p174
      %p176 = scmp.ne.s32.totalorder %s162, %s163
      %p177 = scmp.eq.s32.totalorder %s24, 1
      %p178 = por %p176, %p177
      %p180 = scmp.ne.s32.totalorder %s163, %s179
      %p181 = scmp.eq.s32.totalorder %s24, 0
      %p182 = por %p180, %p181
      %p183 = scmp.le.s32.totalorder 1, %s18
      %p184 = scmp.lt.s32.totalorder %s18, 3
      %p185 = pnand %p183, %p184
      %p186 = pneg %p185
      // Predicated region
      $region9: #{tpu_custom_call.1} parent=5 // pred_check
        _
      $region10: #{tpu_custom_call.1} parent=5 // pred_check_branch
        %188 = sbr.rel (%p185) target = $region12
      $region11: #{tpu_custom_call.1} parent=5 // pred_region
        %s189 = ssub.s32 %s18, 1
        // Predicated region
        $region13: #{tpu_custom_call.1} parent=11 // pred_check
          %p190 = pneg %p79
        $region14: #{tpu_custom_call.1} parent=11 // pred_check_branch
          %192 = sbr.rel (%p190) target = $region16
        $region15: #{tpu_custom_call.1} parent=11 // pred_region
          _
        $region16: #{tpu_custom_call.1} parent=11 // pred_fallthru
          _
        // Predicated region
        $region17: #{tpu_custom_call.1} parent=11 // pred_check
          %p193 = pneg %p100
        $region18: #{tpu_custom_call.1} parent=11 // pred_check_branch
          %195 = sbr.rel (%p193) target = $region20
        $region19: #{tpu_custom_call.1} parent=11 // pred_region
          _
        $region20: #{tpu_custom_call.1} parent=11 // pred_fallthru
          _
        // Predicated region
        $region21: #{tpu_custom_call.1} parent=11 // pred_check
          %p196 = pneg %p121
        $region22: #{tpu_custom_call.1} parent=11 // pred_check_branch
          %198 = sbr.rel (%p196) target = $region24
        $region23: #{tpu_custom_call.1} parent=11 // pred_region
          _
        $region24: #{tpu_custom_call.1} parent=11 // pred_fallthru
          _
      $region12: #{tpu_custom_call.1} parent=5 // pred_fallthru
        _
      %p199 = scmp.lt.s32.totalorder %s18, 2
      // Predicated region
      $region25: #{tpu_custom_call.1} parent=5 // pred_check
        %p200 = pneg %p199
      $region26: #{tpu_custom_call.1} parent=5 // pred_check_branch
        %202 = sbr.rel (%p200) target = $region28
      $region27: #{tpu_custom_call.1} parent=5 // pred_region
        // Predicated region
        $region29: #{tpu_custom_call.1} parent=27 // pred_check
          %p203 = pneg %p52
        $region30: #{tpu_custom_call.1} parent=27 // pred_check_branch
          %205 = sbr.rel (%p203) target = $region32
        $region31: #{tpu_custom_call.1} parent=27 // pred_region
          %p206 = scmp.lt.s32.totalorder %s25, 1
          %s207 = scalar_select %p206, %s25, 1
          %p208 = scmp.lt.s32.totalorder %s26, 0
          %s209 = scalar_select %p208, %s26, 0
          %s210 = sadd.s32 %s209, %s207
          %s211 = smul.addr %s210, 2
          %s212 = scalar_lea.vmem %s0, %s211
        $region32: #{tpu_custom_call.1} parent=27 // pred_fallthru
          _
      $region28: #{tpu_custom_call.1} parent=5 // pred_fallthru
        _
      %p213 = scmp.le.s32.totalorder 1, %s18
      %p214 = scmp.lt.s32.totalorder %s18, 3
      %p215 = pnand %p213, %p214
      %p216 = pneg %p215
      // Predicated region
      $region33: #{tpu_custom_call.1} parent=5 // pred_check
        _
      $region34: #{tpu_custom_call.1} parent=5 // pred_check_branch
        %218 = sbr.rel (%p215) target = $region36
      $region35: #{tpu_custom_call.1} parent=5 // pred_region
        %s219 = ssub.s32 %s18, 1
        %p220 = scmp.lt.s32.totalorder %s27, 1
        %s221 = scalar_select %p220, %s27, 1
        %p222 = scmp.lt.s32.totalorder %s28, 0
        %s223 = scalar_select %p222, %s28, 0
        %s224 = sadd.s32 %s223, %s221
        %s225 = smul.addr %s224, 2
        %s226 = scalar_lea.vmem %s0, %s225
        %p227 = pneg %p58
        %p228 = pneg %p55
        %p229 = pneg %p79
        %p230 = pneg %p76
        %p231 = pneg %p100
        %p232 = pneg %p97
        %p233 = pneg %p121
        %p234 = pneg %p118
        %p235 = pneg %p149
        %p236 = pneg %p146
        %s237 = sand.u32 %s136, 1
        %s238 = scalar_lea.sflag [#allocation3], %s237
        %s239 = sand.u32 %s136, 1
        %s240 = smul.addr %s239, 2
        %s241 = scalar_lea.vmem [#allocation2], %s240
        %p242 = pneg %p175
        %p243 = pneg %p172
        %s244 = sand.u32 %s162, 1
        %s245 = scalar_lea.sflag [#allocation5], %s244
        %s246 = sand.u32 %s162, 1
        %s247 = scalar_lea.vmem [#allocation4], %s246
        %p248 = scmp.lt.s32.totalorder %s27, 1
        %s249 = scalar_select %p248, %s27, 1
        %p250 = scmp.lt.s32.totalorder %s28, 0
        %s251 = scalar_select %p250, %s28, 0
        %s252 = sadd.s32 %s251, %s249
        %s253 = smul.addr %s252, 2
        %s254 = scalar_lea.vmem %s0, %s253
        %v255 = vld [vmem:[%s254] sm:$0x3]
        %v256 = vld [vmem:[%s1] sm:$0xff]
        %v257 = vld [vmem:[%s1 + $0x8] sm:$0xff]
        %v258 = vld [vmem:[%s1 + $0x10] sm:$0xff]
        %v259 = vld [vmem:[%s1 + $0x18] sm:$0xff]
        %v260 = vld [vmem:[%s1 + $0x20] sm:$0xff]
        %v261 = vld [vmem:[%s1 + $0x28] sm:$0xff]
        %v262 = vld [vmem:[%s1 + $0x30] sm:$0xff]
        %v263 = vld [vmem:[%s1 + $0x38] sm:$0xff]
        %v264 = vld [vmem:[%s1 + $0x40] sm:$0xff]
        %v265 = vld [vmem:[%s1 + $0x48] sm:$0xff]
        %v266 = vld [vmem:[%s1 + $0x50] sm:$0xff]
        %v267 = vld [vmem:[%s1 + $0x58] sm:$0xff]
        %v268 = vld [vmem:[%s1 + $0x60] sm:$0xff]
        %v269 = vld [vmem:[%s1 + $0x68] sm:$0xff]
        %v270 = vld [vmem:[%s1 + $0x70] sm:$0xff]
        %v271 = vld [vmem:[%s1 + $0x78] sm:$0xff]
        %v272 = vld [vmem:[%s2] sm:$0x1]
        %v274 = vperm.slane %v272, 0
        %276 = vmatpush.msra.mxu0 %v271
        %277 = vmatpush.msra.mxu0 %v270
        %278 = vmatpush.msra.mxu0 %v269
        %279 = vmatpush.msra.mxu0 %v268
        %280 = vmatpush.msra.mxu0 %v267
        %281 = vmatpush.msra.mxu0 %v266
        %282 = vmatpush.msra.mxu0 %v265
        %283 = vmatpush.msra.mxu0 %v264
        %284 = vmatpush.msra.mxu0 %v263
        %285 = vmatpush.msra.mxu0 %v262
        %286 = vmatpush.msra.mxu0 %v261
        %287 = vmatpush.msra.mxu0 %v260
        %288 = vmatpush.msra.mxu0 %v259
        %289 = vmatpush.msra.mxu0 %v258
        %290 = vmatpush.msra.mxu0 %v257
        %291 = vmatpush.msra.mxu0 %v256
        %292 = vmatmul.f32.gmra.mxu0 %v255
        %v293 = vpop.f32.mrf.mxu0
        %v294 = vadd.f32 %v274, %v293
        %295 = vdwg.mxu0
        %296 = vst [vmem:[%s241] sm:$0x3] %v294
        %vm297 = vcmask 1041408
        %v298 = vsel %vm297, %v255, 0.0
        %v299 = vrot.slane %v298, 4
        %v300 = vadd.f32 %v298, %v299
        %v301 = vrot.slane %v300, 2
        %v302 = vadd.f32 %v300, %v301
        %v303 = vrot.slane %v302, 1
        %v304 = vadd.f32 %v302, %v303
        %v305 = vld [vmem:[%s3] sm:$0xff]
        %v306 = vld [vmem:[%s3 + $0x8] sm:$0xff]
        %v307 = vld [vmem:[%s3 + $0x10] sm:$0xff]
        %v308 = vld [vmem:[%s3 + $0x18] sm:$0xff]
        %v309 = vld [vmem:[%s3 + $0x20] sm:$0xff]
        %v310 = vld [vmem:[%s3 + $0x28] sm:$0xff]
        %v311 = vld [vmem:[%s3 + $0x30] sm:$0xff]
        %v312 = vld [vmem:[%s3 + $0x38] sm:$0xff]
        %v313 = vld [vmem:[%s3 + $0x40] sm:$0xff]
        %v314 = vld [vmem:[%s3 + $0x48] sm:$0xff]
        %v315 = vld [vmem:[%s3 + $0x50] sm:$0xff]
        %v316 = vld [vmem:[%s3 + $0x58] sm:$0xff]
        %v317 = vld [vmem:[%s3 + $0x60] sm:$0xff]
        %v318 = vld [vmem:[%s3 + $0x68] sm:$0xff]
        %v319 = vld [vmem:[%s3 + $0x70] sm:$0xff]
        %v320 = vld [vmem:[%s3 + $0x78] sm:$0xff]
        %321 = vmatpush.msra.mxu0 %v320
        %322 = vmatpush.msra.mxu0 %v319
        %323 = vmatpush.msra.mxu0 %v318
        %324 = vmatpush.msra.mxu0 %v317
        %325 = vmatpush.msra.mxu0 %v316
        %326 = vmatpush.msra.mxu0 %v315
        %327 = vmatpush.msra.mxu0 %v314
        %328 = vmatpush.msra.mxu0 %v313
        %329 = vmatpush.msra.mxu0 %v312
        %330 = vmatpush.msra.mxu0 %v311
        %331 = vmatpush.msra.mxu0 %v310
        %332 = vmatpush.msra.mxu0 %v309
        %333 = vmatpush.msra.mxu0 %v308
        %334 = vmatpush.msra.mxu0 %v307
        %335 = vmatpush.msra.mxu0 %v306
        %336 = vmatpush.msra.mxu0 %v305
        %337 = vmatmul.f32.gmra.mxu0 %v304
        %v338 = vpop.f32.mrf.mxu0
        %v339 = vadd.f32 0.0, %v338
        %340 = vdwg.mxu0
        %p341 = scmp.eq.s32.totalorder %s28, 0
        // Predicated region
        $region37: #{tpu_custom_call.1} parent=35 // pred_check
          %p342 = pneg %p341
        $region38: #{tpu_custom_call.1} parent=35 // pred_check_branch
          %344 = sbr.rel (%p342) target = $region40
        $region39: #{tpu_custom_call.1} parent=35 // pred_region
          %vm345 = vcmask 122880
          %346 = vst.msk [vmem:[%s247] sm:$0x1] %vm345, 0.0
        $region40: #{tpu_custom_call.1} parent=35 // pred_fallthru
          _
        %v347 = vld [vmem:[%s247] sm:$0x1]
        %v348 = vadd.f32 %v347, %v339
        %vm349 = vcmask 122880
        %350 = vst.msk [vmem:[%s247] sm:$0x1] %vm349, %v348
        %s351 = sand.u32 %s136, 1
        %s352 = scalar_lea.sflag [#allocation3], %s351
        %s353 = sand.u32 %s136, 1
        %s354 = smul.addr %s353, 2
        %s355 = scalar_lea.vmem [#allocation2], %s354
        %s356 = sand.u32 %s162, 1
        %s357 = scalar_lea.sflag [#allocation5], %s356
        %s358 = sand.u32 %s162, 1
        %s359 = scalar_lea.vmem [#allocation4], %s358
        // Predicated region
        $region41: #{tpu_custom_call.1} parent=35 // pred_check
          %p360 = pneg %p146
        $region42: #{tpu_custom_call.1} parent=35 // pred_check_branch
          %362 = sbr.rel (%p360) target = $region44
        $region43: #{tpu_custom_call.1} parent=35 // pred_region
          %364 = vsyncadd %s352, 0
          %s365 = sadd.s32 %s28, %s27
          %s366 = smul.addr %s365, 2
          %s367 = scalar_lea.hbm %s4, %s366
          %s369 = sshll.u32 %s355, 4
          %s370 = int_to_ptr.vmem [resolvable:$true] %s369
          %s371 = sshll.u32 %s367, 4
          %s372 = int_to_ptr.hbm [resolvable:$true] %s371
          %374 = dma.vmem_to_hbm [thread:$0]  %s370, 32, %s372, %s352
        $region44: #{tpu_custom_call.1} parent=35 // pred_fallthru
          _
        // Predicated region
        $region45: #{tpu_custom_call.1} parent=35 // pred_check
          %p375 = pneg %p172
        $region46: #{tpu_custom_call.1} parent=35 // pred_check_branch
          %377 = sbr.rel (%p375) target = $region48
        $region47: #{tpu_custom_call.1} parent=35 // pred_region
          %379 = vsyncadd %s357, 0
          %s380 = scalar_lea.hbm %s5, %s27
          %s382 = sshll.u32 %s359, 4
          %s383 = int_to_ptr.vmem [resolvable:$true] %s382
          %s384 = sshll.u32 %s380, 4
          %s385 = int_to_ptr.hbm [resolvable:$true] %s384
          %387 = dma.vmem_to_hbm [thread:$0]  %s383, 16, %s385, %s357
        $region48: #{tpu_custom_call.1} parent=35 // pred_fallthru
          _
      $region36: #{tpu_custom_call.1} parent=5 // pred_fallthru
        _
      %p388 = scmp.le.s32.totalorder 2, %s18
      // Predicated region
      $region49: #{tpu_custom_call.1} parent=5 // pred_check
        %p389 = pneg %p388
      $region50: #{tpu_custom_call.1} parent=5 // pred_check_branch
        %391 = sbr.rel (%p389) target = $region52
      $region51: #{tpu_custom_call.1} parent=5 // pred_region
        %s392 = ssub.s32 %s18, 2
        // Predicated region
        $region53: #{tpu_custom_call.1} parent=51 // pred_check
          %p393 = pneg %p152
        $region54: #{tpu_custom_call.1} parent=51 // pred_check_branch
          %395 = sbr.rel (%p393) target = $region56
        $region55: #{tpu_custom_call.1} parent=51 // pred_region
          %s396 = sand.u32 %s137, 1
          %s397 = scalar_lea.sflag [#allocation3], %s396
          %s398 = sand.u32 %s137, 1
          %s399 = smul.addr %s398, 2
          %s400 = scalar_lea.vmem [#allocation2], %s399
          %402 = dma.done %s397, 32
        $region56: #{tpu_custom_call.1} parent=51 // pred_fallthru
          _
        // Predicated region
        $region57: #{tpu_custom_call.1} parent=51 // pred_check
          %p403 = pneg %p178
        $region58: #{tpu_custom_call.1} parent=51 // pred_check_branch
          %405 = sbr.rel (%p403) target = $region60
        $region59: #{tpu_custom_call.1} parent=51 // pred_region
          %s406 = sand.u32 %s163, 1
          %s407 = scalar_lea.sflag [#allocation5], %s406
          %s408 = sand.u32 %s163, 1
          %s409 = scalar_lea.vmem [#allocation4], %s408
          %411 = dma.done %s407, 16
        $region60: #{tpu_custom_call.1} parent=51 // pred_fallthru
          _
      $region52: #{tpu_custom_call.1} parent=5 // pred_fallthru
        _
    $region6: #{tpu_custom_call.1} parent=1 // loop_footer
      %s22 = sadd.s32 1, %s18
    $region7: #{tpu_custom_call.1} parent=1 // loop_footer_branch
      %17 = sbr.rel target = $region3
    $region8: #{tpu_custom_call.1} parent=1 // loop_exit
      _
    %412 = vsyncpa [#allocation3], 1
    %s413 = scalar_lea.sflag [#allocation3], 1
    %414 = vsyncpa %s413, 1
    %415 = vsyncpa [#allocation5], 1
    %s416 = scalar_lea.sflag [#allocation5], 1
    %417 = vsyncpa %s416, 1

</llo_original>
